<compile_context>
chip_gen: v7x
topology: tpu7x:2x2x1
jax: 0.10.0
libtpu: 0.0.40
codegen_flags: <defaults>
</compile_context>

<pallas_src>
import jax
import jax.numpy as jnp
from jax.experimental import pallas as pl
from jax.experimental.pallas import tpu as pltpu


def da_img_head_kernel(x_ref, w1t_ref, b1_ref, w2t_ref, b2_ref, o_ref):
    # x_ref:   (C, T)   spatial tile of one image, channels on sublanes
    # w1t_ref: (C2, C)  conv1_da weight, transposed to (out, in)
    # b1_ref:  (C2, 1)  conv1_da bias (broadcasts over the spatial lanes)
    # w2t_ref: (1, C2)  conv2_da weight, transposed
    # b2_ref:  (1, 1)   conv2_da bias, scalar in SMEM
    # o_ref:   (1, T)   lane-dense output tile
    h = jnp.dot(w1t_ref[...], x_ref[...], preferred_element_type=jnp.float32)
    h = jnp.maximum(h + b1_ref[...].astype(jnp.float32), 0.0)          # ReLU
    o = jnp.dot(w2t_ref[...].astype(jnp.float32), h,
                preferred_element_type=jnp.float32)
    o = o + b2_ref[0, 0].astype(jnp.float32)
    o_ref[...] = o.astype(o_ref.dtype)


def da_img_head(x_nchw, w1, b1, w2, b2, *, t_hw=1024):
    """DAImgHead forward.

    x_nchw: (N, C, H, W)
    w1:     (C, C//2)   conv1_da weight in channel-matmul form (in, out)
    b1:     (C//2,)
    w2:     (C//2, 1)
    b2:     (1,)
    Returns (N, 1, H, W).
    """
    N, C, H, W = x_nchw.shape
    C2 = w1.shape[1]
    HW = H * W

    # Weight-stationary transposed form (tiny one-time transposes).
    w1t = jnp.transpose(w1)              # (C2, C)
    b1_col = b1.reshape(C2, 1)           # (C2, 1)
    w2t = jnp.transpose(w2)              # (1, C2)
    b2_2d = b2.reshape(1, 1)             # (1, 1)  -> SMEM scalar

    # Free reshape: NCHW -> (N, C, HW); spatial positions become lanes.
    x_rows = x_nchw.reshape(N, C, HW)

    # Lane-dense spatial tile: multiple of 128, as large as requested but no
    # larger than the (128-rounded) spatial extent.  Pad HW so the grid
    # divides evenly (no divisibility assert; tail is padded then sliced off).
    t = min(t_hw, pl.cdiv(HW, 128) * 128)
    t = max(128, (t // 128) * 128)
    HW_pad = pl.cdiv(HW, t) * t
    if HW_pad != HW:
        x_rows = jnp.pad(x_rows, ((0, 0), (0, 0), (0, HW_pad - HW)))

    grid = (N, HW_pad // t)

    # VMEM budget estimate: double-buffered x and out tiles, double-buffered
    # (constant-index) weights, plus the (C2, T) f32 intermediate.  Clamped so
    # it is safe on v7x's 64 MiB physical VMEM while still lifting the small
    # default scoped budget on v5e.
    itemsize = jnp.dtype(x_nchw.dtype).itemsize
    est = (2 * C * t * itemsize            # x tiles
           + 2 * t * itemsize              # out tiles
           + 2 * (C2 * C + 2 * C2) * 4     # w1t / b1 / w2t
           + C2 * t * 4                    # relu intermediate
           + (2 << 20))                    # slack
    vmem_limit = int(min(max(est, 32 << 20), 56 << 20))

    out_rows = pl.pallas_call(
        da_img_head_kernel,
        out_shape=jax.ShapeDtypeStruct((N, 1, HW_pad), x_nchw.dtype),
        grid=grid,
        in_specs=[
            pl.BlockSpec((None, C, t), lambda n, j: (n, 0, j)),    # x tile
            pl.BlockSpec((C2, C), lambda n, j: (0, 0)),            # w1^T
            pl.BlockSpec((C2, 1), lambda n, j: (0, 0)),            # b1
            pl.BlockSpec((1, C2), lambda n, j: (0, 0)),            # w2^T
            pl.BlockSpec(memory_space=pltpu.MemorySpace.SMEM),     # b2 scalar
        ],
        out_specs=pl.BlockSpec((None, 1, t), lambda n, j: (n, 0, j)),
        compiler_params=pltpu.CompilerParams(
            dimension_semantics=("parallel", "parallel"),
            vmem_limit_bytes=vmem_limit),
    )(x_rows, w1t, b1_col, w2t, b2_2d)

    # (N, 1, HW_pad) -> slice off padding -> (N, 1, H, W)   (free reshape)
    return out_rows[:, :, :HW].reshape(N, 1, H, W)


def init_params(key, in_channels):
    """Mirror the PyTorch init: weights ~ N(0, 0.001), biases = 0."""
    c2 = in_channels // 2
    k1, k2 = jax.random.split(key)
    # PyTorch conv weights are (out, in, 1, 1); stored here as (in, out).
    w1 = 0.001 * jax.random.normal(k1, (in_channels, c2), dtype=jnp.float32)
    b1 = jnp.zeros((c2,), dtype=jnp.float32)
    w2 = 0.001 * jax.random.normal(k2, (c2, 1), dtype=jnp.float32)
    b2 = jnp.zeros((1,), dtype=jnp.float32)
    return w1, b1, w2, b2


if __name__ == "__main__":
    key = jax.random.PRNGKey(0)
    k_x, k_p = jax.random.split(key)

    N, C, H, W = 2, 4, 16, 16          # in_channels=4 -> hidden=2 -> out=1
    x = jax.random.normal(k_x, (N, C, H, W), dtype=jnp.float32)
    w1, b1, w2, b2 = init_params(k_p, C)

    out = da_img_head(x, w1, b1, w2, b2)
    out = jax.block_until_ready(out)

    # Plain-JAX reference (same math as the PyTorch forward).
    x_flat = jnp.transpose(x, (0, 2, 3, 1)).reshape(-1, C)
    t_ref = jnp.maximum(x_flat @ w1 + b1[None, :], 0.0)
    o_ref = (t_ref @ w2 + b2[None, :]).reshape(N, H, W, 1).transpose(0, 3, 1, 2)

    assert out.shape == (N, 1, H, W), out.shape
    assert jnp.allclose(out, o_ref, atol=1e-5, rtol=1e-5)
    print("KERNEL_OK")
</pallas_src>

<mosaic_0001>
module attributes {stable_mosaic.version = 11 : i64} {
  func.func @da_img_head_kernel(%arg0: i32, %arg1: i32, %arg2: memref<1x4x256xf32, #tpu.memory_space<vmem>>, %arg3: memref<2x4xf32, #tpu.memory_space<vmem>>, %arg4: memref<2x1xf32, #tpu.memory_space<vmem>>, %arg5: memref<1x2xf32, #tpu.memory_space<vmem>>, %arg6: memref<1x1xf32, #tpu.memory_space<smem>>, %arg7: memref<1x1x256xf32, #tpu.memory_space<vmem>>) attributes {dimension_semantics = [#tpu.dimension_semantics<parallel>, #tpu.dimension_semantics<parallel>], iteration_bounds = array<i64: 2, 1>, scalar_prefetch = 0 : i64, scratch_operands = 0 : i64, tpu.core_type = #tpu.core_type<tc>, window_params = [{transform_indices = @transform_0, window_bounds = array<i64: 1, 4, 256>}, {pipeline_mode = #tpu.pipeline_mode<synchronous>, transform_indices = @transform_1, window_bounds = array<i64: 2, 4>}, {pipeline_mode = #tpu.pipeline_mode<synchronous>, transform_indices = @transform_2, window_bounds = array<i64: 2, 1>}, {pipeline_mode = #tpu.pipeline_mode<synchronous>, transform_indices = @transform_3, window_bounds = array<i64: 1, 2>}, {transform_indices = @transform_4, window_bounds = array<i64: 1, 1>}, {transform_indices = @transform_5, window_bounds = array<i64: 1, 1, 256>}]} {
    %c0 = arith.constant 0 : index
    %c0_0 = arith.constant 0 : index
    %0 = vector.load %arg3[%c0, %c0_0] : memref<2x4xf32, #tpu.memory_space<vmem>>, vector<2x4xf32>
    %c0_1 = arith.constant 0 : index
    %c0_2 = arith.constant 0 : index
    %c0_3 = arith.constant 0 : index
    %1 = vector.load %arg2[%c0_1, %c0_2, %c0_3] : memref<1x4x256xf32, #tpu.memory_space<vmem>>, vector<1x4x256xf32>
    %2 = vector.shape_cast %1 : vector<1x4x256xf32> to vector<4x256xf32>
    %cst = arith.constant dense<0.000000e+00> : vector<2x256xf32>
    %3 = tpu.matmul %0, %2, %cst {dimension_numbers = #tpu.dot_dimension_numbers<[1], [0], [0], [1], [0, 0, 1, 1], [], []>} : vector<2x4xf32>, vector<4x256xf32>, vector<2x256xf32> -> vector<2x256xf32>
    %c0_4 = arith.constant 0 : index
    %c0_5 = arith.constant 0 : index
    %4 = vector.load %arg4[%c0_4, %c0_5] : memref<2x1xf32, #tpu.memory_space<vmem>>, vector<2x1xf32>
    %5 = vector.broadcast %4 : vector<2x1xf32> to vector<2x256xf32>
    %6 = arith.addf %3, %5 : vector<2x256xf32>
    %cst_6 = arith.constant 0.000000e+00 : f32
    %7 = vector.broadcast %cst_6 : f32 to vector<2x256xf32>
    %8 = arith.maximumf %6, %7 : vector<2x256xf32>
    %c0_7 = arith.constant 0 : index
    %c0_8 = arith.constant 0 : index
    %9 = vector.load %arg5[%c0_7, %c0_8] : memref<1x2xf32, #tpu.memory_space<vmem>>, vector<1x2xf32>
    %cst_9 = arith.constant dense<0.000000e+00> : vector<1x256xf32>
    %10 = tpu.matmul %9, %8, %cst_9 {dimension_numbers = #tpu.dot_dimension_numbers<[1], [0], [0], [1], [0, 0, 1, 1], [], []>} : vector<1x2xf32>, vector<2x256xf32>, vector<1x256xf32> -> vector<1x256xf32>
    %c0_10 = arith.constant 0 : index
    %c0_11 = arith.constant 0 : index
    %11 = memref.load %arg6[%c0_10, %c0_11] : memref<1x1xf32, #tpu.memory_space<smem>>
    %12 = vector.broadcast %11 : f32 to vector<1x256xf32>
    %13 = arith.addf %10, %12 : vector<1x256xf32>
    %c0_12 = arith.constant 0 : index
    %c0_13 = arith.constant 0 : index
    %c0_14 = arith.constant 0 : index
    %14 = vector.load %arg7[%c0_12, %c0_13, %c0_14] : memref<1x1x256xf32, #tpu.memory_space<vmem>>, vector<1x1x256xf32>
    %15 = vector.shape_cast %14 : vector<1x1x256xf32> to vector<1x256xf32>
    %16 = vector.shape_cast %13 : vector<1x256xf32> to vector<1x1x256xf32>
    tpu.vector_store %arg7[%c0_12, %c0_13, %c0_14], %16 {strides = array<i32>} : memref<1x1x256xf32, #tpu.memory_space<vmem>>, vector<1x1x256xf32>,
    return
  }
  func.func @transform_0(%arg0: i32, %arg1: i32) -> (i32, i32, i32) {
    %c0_i32 = arith.constant 0 : i32
    %c0_i32_0 = arith.constant 0 : i32
    return %arg0, %c0_i32, %arg1 : i32, i32, i32
  }
  func.func @transform_1(%arg0: i32, %arg1: i32) -> (i32, i32) {
    %c0_i32 = arith.constant 0 : i32
    %c0_i32_0 = arith.constant 0 : i32
    %c0_i32_1 = arith.constant 0 : i32
    return %c0_i32, %c0_i32_0 : i32, i32
  }
  func.func @transform_2(%arg0: i32, %arg1: i32) -> (i32, i32) {
    %c0_i32 = arith.constant 0 : i32
    %c0_i32_0 = arith.constant 0 : i32
    %c0_i32_1 = arith.constant 0 : i32
    return %c0_i32, %c0_i32_0 : i32, i32
  }
  func.func @transform_3(%arg0: i32, %arg1: i32) -> (i32, i32) {
    %c0_i32 = arith.constant 0 : i32
    %c0_i32_0 = arith.constant 0 : i32
    %c0_i32_1 = arith.constant 0 : i32
    return %c0_i32, %c0_i32_0 : i32, i32
  }
  func.func @transform_4(%arg0: i32, %arg1: i32) -> (i32, i32) {
    %c0_i32 = arith.constant 0 : i32
    %c0_i32_0 = arith.constant 0 : i32
    %c0_i32_1 = arith.constant 0 : i32
    return %c0_i32, %c0_i32_0 : i32, i32
  }
  func.func @transform_5(%arg0: i32, %arg1: i32) -> (i32, i32, i32) {
    %c0_i32 = arith.constant 0 : i32
    %c0_i32_0 = arith.constant 0 : i32
    return %arg0, %c0_i32, %arg1 : i32, i32, i32
  }
}

</mosaic_0001>

<llo_original>
// kernel: tpu_custom_call.1
$region0: #{tpu_custom_call.1}
  #allocation0 [shape = 'u32[]', space=smem, size = 0x4, offset = 0x4, fixed_abs, tag = 'smem constant byte address 0x4 - core index']
  #allocation1 [shape = 'u32[144,128]{1,0:T(1,128)}', space=vmem, size = 0x12000, scoped, tag = 'internal scratch']
  #allocation2 [shape = 'f32[1,1]{1,0:T(1,128)S(6)}', space=smem, size = 0x200, scoped, tag = 'scoped memory for tpu_custom_call.1']
  %s0 = inlined_call_operand.hbm [shape: f32[2,4,256], index: 0, kind: input, shape index: {}]
  %s1 = inlined_call_operand.vmem [shape: f32[2,4], index: 1, kind: input, shape index: {}]
  %s2 = inlined_call_operand.vmem [shape: f32[2,1], index: 2, kind: input, shape index: {}]
  %s3 = inlined_call_operand.vmem [shape: f32[1,2], index: 3, kind: input, shape index: {}]
  %s4 = inlined_call_operand.<no memory space> [shape: f32[1,1], index: 4, kind: input, shape index: {}]
  %s5 = inlined_call_operand.hbm [shape: f32[2,1,256], index: 5, kind: output, shape index: {}]
  %s6 = sld [smem:[#allocation0]]
  $region57: #{tpu_custom_call.1} parent=0
    _
  %s8 = ssub.s32 1, %s6
  %s9 = scalar_select 0, %s8, %s6
  %10 = sst [smem:[#allocation2]] %s4
  $region1: #{tpu_custom_call.1} parent=0
    #allocation3 [shape = 'u8[8192]{0}', space=vmem, size = 0x2000, scoped, tag = 'input window, operand 0']
    #allocation4 [shape = 's32[2]{0}', space=sflag, size = 0x8, scoped, tag = 'scoped memory for tpu_custom_call.1']
    #allocation5 [shape = 's32[2]{0}', space=sflag, size = 0x8, scoped, tag = 'scoped memory for tpu_custom_call.1']
    #allocation6 [shape = 'u8[2048]{0}', space=vmem, size = 0x800, scoped, tag = 'output window, operand 0']
    %11 = vsyncpa [#allocation4], 0
    %s12 = scalar_lea.sflag [#allocation4], 1
    %13 = vsyncpa %s12, 0
    %14 = vsyncpa [#allocation5], 0
    %s15 = scalar_lea.sflag [#allocation5], 1
    %16 = vsyncpa %s15, 0
    loop: start=0, step=1, limit=4
    $region2: #{tpu_custom_call.1} parent=1 // loop_pre_header
      _
    $region3: #{tpu_custom_call.1} parent=1 // loop_header
      %s18 = sphi 0, %s22
      %p19 = scmp.ge.s32.totalorder %s18, 4
      %s25 = sphi 0, %s37
      %s26 = sphi 0, %s33
      %s27 = sphi 0, %s25
      %s28 = sphi 0, %s26
      %s29 = sphi 0, %s27
      %s30 = sphi 0, %s28
      %s42 = sphi 0, %s44
      %s45 = sphi 0, %s42
      %s46 = sphi 0, %s45
      %s62 = sphi 0, %s46
      %s66 = sphi 0, %s66
      %s68 = sphi 0, %s66
      %s69 = sphi 0, %s68
      %s83 = sphi 0, %s69
      %s87 = sphi 0, %s87
      %s89 = sphi 0, %s87
      %s90 = sphi 0, %s89
      %s104 = sphi 0, %s90
      %s108 = sphi 0, %s108
      %s110 = sphi 0, %s108
      %s111 = sphi 0, %s110
      %s125 = sphi 0, %s111
      %s129 = sphi 0, %s129
      %s131 = sphi 0, %s129
      %s132 = sphi 0, %s131
      %s146 = sphi 0, %s132
      %s154 = sphi 0, %s156
      %s157 = sphi 0, %s154
      %s158 = sphi 0, %s157
      %s174 = sphi 0, %s158
    $region4: #{tpu_custom_call.1} parent=1 // loop_header_branch
      %21 = sbr.rel (%p19) target = $region8
    $region5: #{tpu_custom_call.1} parent=1 // loop_body
      %s23 = ssub.s32 %s18, 1
      %s24 = ssub.s32 %s18, 2
      %s31 = sadd.s32 1, %s26
      %p32 = scmp.ge.s32.totalorder %s31, 1
      %s33 = scalar_select %p32, 0, %s31
      %s34 = sadd.s32 1, %s25
      %s35 = scalar_select %p32, %s34, %s25
      %p36 = scmp.ge.s32.totalorder %s35, 2
      %s37 = scalar_select %p36, 0, %s35
      %s38 = ssub.s32 %s25, %s37
      %s39 = ssub.s32 %s26, %s33
      %s40 = sor.u32 %s38, %s39
      %p41 = scmp.eq.s32.totalorder %s40, 0
      %s43 = sadd.s32 %s42, 1
      %s44 = scalar_select %p41, %s42, %s43
      %p47 = pneg %p41
      %p48 = scmp.eq.s32.totalorder %s18, 1
      %p49 = por %p47, %p48
      %p50 = scmp.ne.s32.totalorder %s42, %s45
      %p51 = scmp.eq.s32.totalorder %s18, 0
      %p52 = por %p50, %p51
      %p53 = scmp.ne.s32.totalorder %s42, %s45
      %p54 = scmp.eq.s32.totalorder %s23, 1
      %p55 = por %p53, %p54
      %p56 = scmp.ne.s32.totalorder %s45, %s46
      %p57 = scmp.eq.s32.totalorder %s23, 0
      %p58 = por %p56, %p57
      %p59 = scmp.ne.s32.totalorder %s45, %s46
      %p60 = scmp.eq.s32.totalorder %s24, 1
      %p61 = por %p59, %p60
      %p63 = scmp.ne.s32.totalorder %s46, %s62
      %p64 = scmp.eq.s32.totalorder %s24, 0
      %p65 = por %p63, %p64
      %s67 = sadd.s32 %s66, 1
      %p70 = scmp.eq.s32.totalorder %s18, 1
      %p71 = scmp.ne.s32.totalorder %s66, %s68
      %p72 = scmp.eq.s32.totalorder %s18, 0
      %p73 = por %p71, %p72
      %p74 = scmp.ne.s32.totalorder %s66, %s68
      %p75 = scmp.eq.s32.totalorder %s23, 1
      %p76 = por %p74, %p75
      %p77 = scmp.ne.s32.totalorder %s68, %s69
      %p78 = scmp.eq.s32.totalorder %s23, 0
      %p79 = por %p77, %p78
      %p80 = scmp.ne.s32.totalorder %s68, %s69
      %p81 = scmp.eq.s32.totalorder %s24, 1
      %p82 = por %p80, %p81
      %p84 = scmp.ne.s32.totalorder %s69, %s83
      %p85 = scmp.eq.s32.totalorder %s24, 0
      %p86 = por %p84, %p85
      %s88 = sadd.s32 %s87, 1
      %p91 = scmp.eq.s32.totalorder %s18, 1
      %p92 = scmp.ne.s32.totalorder %s87, %s89
      %p93 = scmp.eq.s32.totalorder %s18, 0
      %p94 = por %p92, %p93
      %p95 = scmp.ne.s32.totalorder %s87, %s89
      %p96 = scmp.eq.s32.totalorder %s23, 1
      %p97 = por %p95, %p96
      %p98 = scmp.ne.s32.totalorder %s89, %s90
      %p99 = scmp.eq.s32.totalorder %s23, 0
      %p100 = por %p98, %p99
      %p101 = scmp.ne.s32.totalorder %s89, %s90
      %p102 = scmp.eq.s32.totalorder %s24, 1
      %p103 = por %p101, %p102
      %p105 = scmp.ne.s32.totalorder %s90, %s104
      %p106 = scmp.eq.s32.totalorder %s24, 0
      %p107 = por %p105, %p106
      %s109 = sadd.s32 %s108, 1
      %p112 = scmp.eq.s32.totalorder %s18, 1
      %p113 = scmp.ne.s32.totalorder %s108, %s110
      %p114 = scmp.eq.s32.totalorder %s18, 0
      %p115 = por %p113, %p114
      %p116 = scmp.ne.s32.totalorder %s108, %s110
      %p117 = scmp.eq.s32.totalorder %s23, 1
      %p118 = por %p116, %p117
      %p119 = scmp.ne.s32.totalorder %s110, %s111
      %p120 = scmp.eq.s32.totalorder %s23, 0
      %p121 = por %p119, %p120
      %p122 = scmp.ne.s32.totalorder %s110, %s111
      %p123 = scmp.eq.s32.totalorder %s24, 1
      %p124 = por %p122, %p123
      %p126 = scmp.ne.s32.totalorder %s111, %s125
      %p127 = scmp.eq.s32.totalorder %s24, 0
      %p128 = por %p126, %p127
      %s130 = sadd.s32 %s129, 1
      %p133 = scmp.eq.s32.totalorder %s18, 1
      %p134 = scmp.ne.s32.totalorder %s129, %s131
      %p135 = scmp.eq.s32.totalorder %s18, 0
      %p136 = por %p134, %p135
      %p137 = scmp.ne.s32.totalorder %s129, %s131
      %p138 = scmp.eq.s32.totalorder %s23, 1
      %p139 = por %p137, %p138
      %p140 = scmp.ne.s32.totalorder %s131, %s132
      %p141 = scmp.eq.s32.totalorder %s23, 0
      %p142 = por %p140, %p141
      %p143 = scmp.ne.s32.totalorder %s131, %s132
      %p144 = scmp.eq.s32.totalorder %s24, 1
      %p145 = por %p143, %p144
      %p147 = scmp.ne.s32.totalorder %s132, %s146
      %p148 = scmp.eq.s32.totalorder %s24, 0
      %p149 = por %p147, %p148
      %s150 = ssub.s32 %s25, %s37
      %s151 = ssub.s32 %s26, %s33
      %s152 = sor.u32 %s150, %s151
      %p153 = scmp.eq.s32.totalorder %s152, 0
      %s155 = sadd.s32 %s154, 1
      %s156 = scalar_select %p153, %s154, %s155
      %p159 = pneg %p153
      %p160 = scmp.eq.s32.totalorder %s18, 1
      %p161 = por %p159, %p160
      %p162 = scmp.ne.s32.totalorder %s154, %s157
      %p163 = scmp.eq.s32.totalorder %s18, 0
      %p164 = por %p162, %p163
      %p165 = scmp.ne.s32.totalorder %s154, %s157
      %p166 = scmp.eq.s32.totalorder %s23, 1
      %p167 = por %p165, %p166
      %p168 = scmp.ne.s32.totalorder %s157, %s158
      %p169 = scmp.eq.s32.totalorder %s23, 0
      %p170 = por %p168, %p169
      %p171 = scmp.ne.s32.totalorder %s157, %s158
      %p172 = scmp.eq.s32.totalorder %s24, 1
      %p173 = por %p171, %p172
      %p175 = scmp.ne.s32.totalorder %s158, %s174
      %p176 = scmp.eq.s32.totalorder %s24, 0
      %p177 = por %p175, %p176
      %p178 = scmp.le.s32.totalorder 1, %s18
      %p179 = scmp.lt.s32.totalorder %s18, 3
      %p180 = pnand %p178, %p179
      %p181 = pneg %p180
      // Predicated region
      $region9: #{tpu_custom_call.1} parent=5 // pred_check
        _
      $region10: #{tpu_custom_call.1} parent=5 // pred_check_branch
        %183 = sbr.rel (%p180) target = $region12
      $region11: #{tpu_custom_call.1} parent=5 // pred_region
        %s184 = ssub.s32 %s18, 1
        // Predicated region
        $region13: #{tpu_custom_call.1} parent=11 // pred_check
          %p185 = pneg %p79
        $region14: #{tpu_custom_call.1} parent=11 // pred_check_branch
          %187 = sbr.rel (%p185) target = $region16
        $region15: #{tpu_custom_call.1} parent=11 // pred_region
          _
        $region16: #{tpu_custom_call.1} parent=11 // pred_fallthru
          _
        // Predicated region
        $region17: #{tpu_custom_call.1} parent=11 // pred_check
          %p188 = pneg %p100
        $region18: #{tpu_custom_call.1} parent=11 // pred_check_branch
          %190 = sbr.rel (%p188) target = $region20
        $region19: #{tpu_custom_call.1} parent=11 // pred_region
          _
        $region20: #{tpu_custom_call.1} parent=11 // pred_fallthru
          _
        // Predicated region
        $region21: #{tpu_custom_call.1} parent=11 // pred_check
          %p191 = pneg %p121
        $region22: #{tpu_custom_call.1} parent=11 // pred_check_branch
          %193 = sbr.rel (%p191) target = $region24
        $region23: #{tpu_custom_call.1} parent=11 // pred_region
          _
        $region24: #{tpu_custom_call.1} parent=11 // pred_fallthru
          _
        // Predicated region
        $region25: #{tpu_custom_call.1} parent=11 // pred_check
          %p194 = pneg %p142
        $region26: #{tpu_custom_call.1} parent=11 // pred_check_branch
          %196 = sbr.rel (%p194) target = $region28
        $region27: #{tpu_custom_call.1} parent=11 // pred_region
          _
        $region28: #{tpu_custom_call.1} parent=11 // pred_fallthru
          _
      $region12: #{tpu_custom_call.1} parent=5 // pred_fallthru
        _
      %p197 = scmp.lt.s32.totalorder %s18, 2
      // Predicated region
      $region29: #{tpu_custom_call.1} parent=5 // pred_check
        %p198 = pneg %p197
      $region30: #{tpu_custom_call.1} parent=5 // pred_check_branch
        %200 = sbr.rel (%p198) target = $region32
      $region31: #{tpu_custom_call.1} parent=5 // pred_region
        // Predicated region
        $region33: #{tpu_custom_call.1} parent=31 // pred_check
          %p201 = pneg %p52
        $region34: #{tpu_custom_call.1} parent=31 // pred_check_branch
          %203 = sbr.rel (%p201) target = $region36
        $region35: #{tpu_custom_call.1} parent=31 // pred_region
          %s204 = sand.u32 %s42, 1
          %s205 = scalar_lea.sflag [#allocation4], %s204
          %s206 = sand.u32 %s42, 1
          %s207 = smul.addr %s206, 8
          %s208 = scalar_lea.vmem [#allocation3], %s207
          %s209 = smul.u32 2, %s26
          %s211 = ssub.s32 128, 128
          %212 = vsyncadd %s205, %s211
          %s213 = smul.addr %s25, 2
          %s214 = sadd.s32 %s209, %s213
          %s215 = smul.addr %s214, 64
          %s216 = scalar_lea.hbm %s0, %s215
          %s218 = sshll.u32 %s208, 4
          %s219 = int_to_ptr.vmem [resolvable:$true] %s218
          %221 = dma.hbm_to_vmem [thread:$0]  %s216, 128, %s219, %s205
        $region36: #{tpu_custom_call.1} parent=31 // pred_fallthru
          _
      $region32: #{tpu_custom_call.1} parent=5 // pred_fallthru
        _
      %p222 = scmp.le.s32.totalorder 1, %s18
      %p223 = scmp.lt.s32.totalorder %s18, 3
      %p224 = pnand %p222, %p223
      %p225 = pneg %p224
      // Predicated region
      $region37: #{tpu_custom_call.1} parent=5 // pred_check
        _
      $region38: #{tpu_custom_call.1} parent=5 // pred_check_branch
        %227 = sbr.rel (%p224) target = $region40
      $region39: #{tpu_custom_call.1} parent=5 // pred_region
        %s228 = ssub.s32 %s18, 1
        %s229 = sand.u32 %s45, 1
        %s230 = scalar_lea.sflag [#allocation4], %s229
        %s231 = sand.u32 %s45, 1
        %s232 = smul.addr %s231, 8
        %s233 = scalar_lea.vmem [#allocation3], %s232
        // Predicated region
        $region41: #{tpu_custom_call.1} parent=39 // pred_check
          %p234 = pneg %p58
        $region42: #{tpu_custom_call.1} parent=39 // pred_check_branch
          %236 = sbr.rel (%p234) target = $region44
        $region43: #{tpu_custom_call.1} parent=39 // pred_region
          %237 = dma.done %s230, 128
        $region44: #{tpu_custom_call.1} parent=39 // pred_fallthru
          _
        %s238 = sand.u32 %s45, 1
        %s239 = scalar_lea.sflag [#allocation4], %s238
        %s240 = sand.u32 %s45, 1
        %s241 = smul.addr %s240, 8
        %s242 = scalar_lea.vmem [#allocation3], %s241
        %p243 = pneg %p58
        %p244 = pneg %p55
        %p245 = pneg %p79
        %p246 = pneg %p76
        %p247 = pneg %p100
        %p248 = pneg %p97
        %p249 = pneg %p121
        %p250 = pneg %p118
        %p251 = pneg %p142
        %p252 = pneg %p139
        %p253 = pneg %p170
        %p254 = pneg %p167
        %s255 = sand.u32 %s157, 1
        %s256 = scalar_lea.sflag [#allocation5], %s255
        %s257 = sand.u32 %s157, 1
        %s258 = smul.addr %s257, 2
        %s259 = scalar_lea.vmem [#allocation6], %s258
        %s260 = smul.u32 2, %s28
        %s261 = smul.u32 2, %s28
        %v262 = vld [vmem:[%s1] sm:$0x3]
        %v263 = vld [vmem:[%s233] sm:$0xff]
        %v264 = vld [vmem:[%s2] sm:$0x3]
        %266 = vset.pattern.permute.xlu0 0
        %267 = vperm.xlu0 %266, %v264
        %v268 = vpop.permute.xlu0 %267
        %v271 = vcombine.high %v263, %v263
        %vm272 = vcmask 31744
        %v274 = vsel %vm272, %v262, 0
        %vm276 = vcmask 1043456
        %v277 = vsel %vm276, %v263, 0
        %v279 = vsel %vm276, %v271, 0
        %281 = vmatprep.subr.mxu0 %v279
        %282 = vmatpush1.msra.mxu0 %v277
        %283 = vmatprep.subr.mxu0 0.0
        %284 = vmatpush1.msra.mxu0 0.0
        %285 = vmatprep.subr.mxu0 0.0
        %286 = vmatpush1.msra.mxu0 0.0
        %287 = vmatprep.subr.mxu0 0.0
        %288 = vmatpush1.msra.mxu0 0.0
        %289 = vmatprep.subr.mxu0 0.0
        %290 = vmatpush1.msra.mxu0 0.0
        %291 = vmatprep.subr.mxu0 0.0
        %292 = vmatpush1.msra.mxu0 0.0
        %293 = vmatprep.subr.mxu0 0.0
        %294 = vmatpush1.msra.mxu0 0.0
        %295 = vmatprep.subr.mxu0 0.0
        %296 = vmatpush1.msra.mxu0 0.0
        %297 = vmatprep.subr.mxu0 0.0
        %298 = vmatpush1.msra.mxu0 0.0
        %299 = vmatprep.subr.mxu0 0.0
        %300 = vmatpush1.msra.mxu0 0.0
        %301 = vmatprep.subr.mxu0 0.0
        %302 = vmatpush1.msra.mxu0 0.0
        %303 = vmatprep.subr.mxu0 0.0
        %304 = vmatpush1.msra.mxu0 0.0
        %305 = vmatprep.subr.mxu0 0.0
        %306 = vmatpush1.msra.mxu0 0.0
        %307 = vmatprep.subr.mxu0 0.0
        %308 = vmatpush1.msra.mxu0 0.0
        %309 = vmatprep.subr.mxu0 0.0
        %310 = vmatpush1.msra.mxu0 0.0
        %311 = vmatprep.subr.mxu0 0.0
        %312 = vmatpush1.msra.mxu0 0.0
        %313 = vmatprep.subr.mxu0 0.0
        %314 = vmatpush1.msra.mxu0 0.0
        %315 = vmatprep.subr.mxu0 0.0
        %316 = vmatpush1.msra.mxu0 0.0
        %317 = vmatprep.subr.mxu0 0.0
        %318 = vmatpush1.msra.mxu0 0.0
        %319 = vmatprep.subr.mxu0 0.0
        %320 = vmatpush1.msra.mxu0 0.0
        %321 = vmatprep.subr.mxu0 0.0
        %322 = vmatpush1.msra.mxu0 0.0
        %323 = vmatprep.subr.mxu0 0.0
        %324 = vmatpush1.msra.mxu0 0.0
        %325 = vmatprep.subr.mxu0 0.0
        %326 = vmatpush1.msra.mxu0 0.0
        %327 = vmatprep.subr.mxu0 0.0
        %328 = vmatpush1.msra.mxu0 0.0
        %329 = vmatprep.subr.mxu0 0.0
        %330 = vmatpush1.msra.mxu0 0.0
        %331 = vmatprep.subr.mxu0 0.0
        %332 = vmatpush1.msra.mxu0 0.0
        %333 = vmatprep.subr.mxu0 0.0
        %334 = vmatpush1.msra.mxu0 0.0
        %335 = vmatprep.subr.mxu0 0.0
        %336 = vmatpush1.msra.mxu0 0.0
        %337 = vmatprep.subr.mxu0 0.0
        %338 = vmatpush1.msra.mxu0 0.0
        %339 = vmatprep.subr.mxu0 0.0
        %340 = vmatpush1.msra.mxu0 0.0
        %341 = vmatprep.subr.mxu0 0.0
        %342 = vmatpush1.msra.mxu0 0.0
        %343 = vmatprep.subr.mxu0 0.0
        %344 = vmatpush1.msra.mxu0 0.0
        %345 = vmatprep.mubr.f32.mxu0 0.0
        %346 = vmatmul.mubr.f32.gmra.mrb[0].mxu0 %v274
        %v347 = vpop.f32.mrb[0].mxu0
        %v348 = vadd.f32 %v268, %v347
        %v349 = vpop.f32.mrb[0].mxu0
        %v350 = vadd.f32 %v268, %v349
        %351 = vdwg.mxu0
        %v352 = vmax.f32 %v348, 0.0
        %v353 = vmax.f32 %v350, 0.0
        %v354 = vld [vmem:[%s3] sm:$0x1]
        %s355 = sld [smem:[#allocation2]]
        %v356 = vstv %s355
        %vm357 = vcmask 15360
        %v359 = vsel %vm357, %v354, 0
        %vm361 = vcmask 1041408
        %v363 = vsel %vm361, %v352, 0
        %v366 = vsel %vm361, %v353, 0
        %368 = vmatprep.subr.mxu0 %v366
        %369 = vmatpush1.msra.mxu0 %v363
        %370 = vmatprep.subr.mxu0 0.0
        %371 = vmatpush1.msra.mxu0 0.0
        %372 = vmatprep.subr.mxu0 0.0
        %373 = vmatpush1.msra.mxu0 0.0
        %374 = vmatprep.subr.mxu0 0.0
        %375 = vmatpush1.msra.mxu0 0.0
        %376 = vmatprep.subr.mxu0 0.0
        %377 = vmatpush1.msra.mxu0 0.0
        %378 = vmatprep.subr.mxu0 0.0
        %379 = vmatpush1.msra.mxu0 0.0
        %380 = vmatprep.subr.mxu0 0.0
        %381 = vmatpush1.msra.mxu0 0.0
        %382 = vmatprep.subr.mxu0 0.0
        %383 = vmatpush1.msra.mxu0 0.0
        %384 = vmatprep.subr.mxu0 0.0
        %385 = vmatpush1.msra.mxu0 0.0
        %386 = vmatprep.subr.mxu0 0.0
        %387 = vmatpush1.msra.mxu0 0.0
        %388 = vmatprep.subr.mxu0 0.0
        %389 = vmatpush1.msra.mxu0 0.0
        %390 = vmatprep.subr.mxu0 0.0
        %391 = vmatpush1.msra.mxu0 0.0
        %392 = vmatprep.subr.mxu0 0.0
        %393 = vmatpush1.msra.mxu0 0.0
        %394 = vmatprep.subr.mxu0 0.0
        %395 = vmatpush1.msra.mxu0 0.0
        %396 = vmatprep.subr.mxu0 0.0
        %397 = vmatpush1.msra.mxu0 0.0
        %398 = vmatprep.subr.mxu0 0.0
        %399 = vmatpush1.msra.mxu0 0.0
        %400 = vmatprep.subr.mxu0 0.0
        %401 = vmatpush1.msra.mxu0 0.0
        %402 = vmatprep.subr.mxu0 0.0
        %403 = vmatpush1.msra.mxu0 0.0
        %404 = vmatprep.subr.mxu0 0.0
        %405 = vmatpush1.msra.mxu0 0.0
        %406 = vmatprep.subr.mxu0 0.0
        %407 = vmatpush1.msra.mxu0 0.0
        %408 = vmatprep.subr.mxu0 0.0
        %409 = vmatpush1.msra.mxu0 0.0
        %410 = vmatprep.subr.mxu0 0.0
        %411 = vmatpush1.msra.mxu0 0.0
        %412 = vmatprep.subr.mxu0 0.0
        %413 = vmatpush1.msra.mxu0 0.0
        %414 = vmatprep.subr.mxu0 0.0
        %415 = vmatpush1.msra.mxu0 0.0
        %416 = vmatprep.subr.mxu0 0.0
        %417 = vmatpush1.msra.mxu0 0.0
        %418 = vmatprep.subr.mxu0 0.0
        %419 = vmatpush1.msra.mxu0 0.0
        %420 = vmatprep.subr.mxu0 0.0
        %421 = vmatpush1.msra.mxu0 0.0
        %422 = vmatprep.subr.mxu0 0.0
        %423 = vmatpush1.msra.mxu0 0.0
        %424 = vmatprep.subr.mxu0 0.0
        %425 = vmatpush1.msra.mxu0 0.0
        %426 = vmatprep.subr.mxu0 0.0
        %427 = vmatpush1.msra.mxu0 0.0
        %428 = vmatprep.subr.mxu0 0.0
        %429 = vmatpush1.msra.mxu0 0.0
        %430 = vmatprep.subr.mxu0 0.0
        %431 = vmatpush1.msra.mxu0 0.0
        %432 = vmatprep.mubr.f32.mxu0 0.0
        %433 = vmatmul.mubr.f32.gmra.mrb[0].mxu0 %v359
        %v434 = vpop.f32.mrb[0].mxu0
        %v435 = vadd.f32 %v356, %v434
        %v436 = vpop.f32.mrb[0].mxu0
        %v437 = vadd.f32 %v356, %v436
        %438 = vdwg.mxu0
        %v441 = vcombine.low %v435, %v437
        %v443 = vunpack.c.l.s4 1966171168
        %v444 = vunpack.c.0.s8 %v443
        %v445 = vlaneseq
        %v446 = vshrl.u32 %v445, 7
        %v447 = vsub.s32 %v444, %v446
        %v448 = vrot.slane %v441, %v447
        %v450 = vunpack.c.l.s4 1966171168
        %v451 = vunpack.c.0.s8 %v450
        %v452 = vlaneseq
        %v453 = vshrl.u32 %v452, 7
        %v454 = vsub.s32 %v451, %v453
        %v455 = vrot.slane %v448, %v454
        %v457 = vlaneseq
        %vm458 = vcmp.ge.s32.totalorder %v457, 0
        %vm459 = vcmp.lt.s32.totalorder %v457, 256
        %vm460 = vmand %vm458, %vm459
        %461 = vst.msk [vmem:[%s259] sm:$0x3] %vm460, %v455
        %s462 = sand.u32 %s157, 1
        %s463 = scalar_lea.sflag [#allocation5], %s462
        %s464 = sand.u32 %s157, 1
        %s465 = smul.addr %s464, 2
        %s466 = scalar_lea.vmem [#allocation6], %s465
        // Predicated region
        $region45: #{tpu_custom_call.1} parent=39 // pred_check
          %p467 = pneg %p167
        $region46: #{tpu_custom_call.1} parent=39 // pred_check_branch
          %469 = sbr.rel (%p467) target = $region48
        $region47: #{tpu_custom_call.1} parent=39 // pred_region
          %s470 = smul.u32 2, %s28
          %s472 = ssub.s32 32, 32
          %473 = vsyncadd %s463, %s472
          %s474 = smul.addr %s27, 2
          %s475 = sadd.s32 %s470, %s474
          %s476 = smul.addr %s475, 16
          %s477 = scalar_lea.hbm %s5, %s476
          %s479 = sshll.u32 %s466, 4
          %s480 = int_to_ptr.vmem [resolvable:$true] %s479
          %482 = dma.vmem_to_hbm [thread:$0]  %s480, 32, %s477, %s463
        $region48: #{tpu_custom_call.1} parent=39 // pred_fallthru
          _
      $region40: #{tpu_custom_call.1} parent=5 // pred_fallthru
        _
      %p483 = scmp.le.s32.totalorder 2, %s18
      // Predicated region
      $region49: #{tpu_custom_call.1} parent=5 // pred_check
        %p484 = pneg %p483
      $region50: #{tpu_custom_call.1} parent=5 // pred_check_branch
        %486 = sbr.rel (%p484) target = $region52
      $region51: #{tpu_custom_call.1} parent=5 // pred_region
        %s487 = ssub.s32 %s18, 2
        // Predicated region
        $region53: #{tpu_custom_call.1} parent=51 // pred_check
          %p488 = pneg %p173
        $region54: #{tpu_custom_call.1} parent=51 // pred_check_branch
          %490 = sbr.rel (%p488) target = $region56
        $region55: #{tpu_custom_call.1} parent=51 // pred_region
          %s491 = sand.u32 %s158, 1
          %s492 = scalar_lea.sflag [#allocation5], %s491
          %s493 = sand.u32 %s158, 1
          %s494 = smul.addr %s493, 2
          %s495 = scalar_lea.vmem [#allocation6], %s494
          %496 = dma.done %s492, 32
        $region56: #{tpu_custom_call.1} parent=51 // pred_fallthru
          _
      $region52: #{tpu_custom_call.1} parent=5 // pred_fallthru
        _
    $region6: #{tpu_custom_call.1} parent=1 // loop_footer
      %s22 = sadd.s32 1, %s18
    $region7: #{tpu_custom_call.1} parent=1 // loop_footer_branch
      %17 = sbr.rel target = $region3
    $region8: #{tpu_custom_call.1} parent=1 // loop_exit
      _
    %497 = vsyncpa [#allocation4], 1
    %s498 = scalar_lea.sflag [#allocation4], 1
    %499 = vsyncpa %s498, 1
    %500 = vsyncpa [#allocation5], 1
    %s501 = scalar_lea.sflag [#allocation5], 1
    %502 = vsyncpa %s501, 1

</llo_original>
